<compile_context>
chip_gen: v7x
topology: tpu7x:2x2x1
jax: 0.10.0
libtpu: 0.0.40
codegen_flags: <defaults>
</compile_context>

<pallas_src>
import functools

import jax
import jax.numpy as jnp
from jax import lax
from jax.experimental import pallas as pl
from jax.experimental.pallas import tpu as pltpu


def _pick_tile(dim, target):
    """Use `target` if it divides `dim`, otherwise the full dim (layout-safe)."""
    return target if dim % target == 0 else dim


# ----------------------------------------------------------------------------
# Kernel 1: K-tiled matmul with f32 accumulator (qkv_proj and o_proj)
# ----------------------------------------------------------------------------
def _matmul_kernel(x_ref, w_ref, o_ref, acc_ref):
    @pl.when(pl.program_id(2) == 0)
    def _():
        acc_ref[...] = jnp.zeros_like(acc_ref)

    acc_ref[...] += jnp.dot(x_ref[...], w_ref[...],
                            preferred_element_type=jnp.float32)

    @pl.when(pl.program_id(2) == pl.num_programs(2) - 1)
    def _():
        o_ref[...] = acc_ref[...].astype(o_ref.dtype)


def pallas_matmul(x, w, *, tm=512, tn=512, tk=512):
    """x @ w (x: [M, K], w: [K, N]) with grid (M//tm, N//tn, K//tk)."""
    M, K = x.shape
    K2, N = w.shape
    assert K == K2
    tm = _pick_tile(M, tm)
    tn = _pick_tile(N, tn)
    tk = _pick_tile(K, tk)
    itemsize = x.dtype.itemsize
    return pl.pallas_call(
        _matmul_kernel,
        out_shape=jax.ShapeDtypeStruct((M, N), x.dtype),
        grid_spec=pltpu.PrefetchScalarGridSpec(
            num_scalar_prefetch=0,
            grid=(M // tm, N // tn, K // tk),
            in_specs=[
                pl.BlockSpec((tm, tk), lambda i, j, k: (i, k)),
                pl.BlockSpec((tk, tn), lambda i, j, k: (k, j)),
            ],
            out_specs=pl.BlockSpec((tm, tn), lambda i, j, k: (i, j)),
            scratch_shapes=[pltpu.VMEM((tm, tn), jnp.float32)],
        ),
        compiler_params=pltpu.CompilerParams(
            dimension_semantics=("parallel", "parallel", "arbitrary"),
            vmem_limit_bytes=32 * 1024 * 1024,
        ),
        cost_estimate=pl.CostEstimate(
            flops=2 * M * N * K,
            transcendentals=0,
            bytes_accessed=(M * K + K * N + M * N) * itemsize,
        ),
    )(x, w)


# ----------------------------------------------------------------------------
# Kernel 2: one-pass neox RoPE on K  (applied once per key, outside attention)
#   k: [T, NKV, D]   cos/sin: [T, D/2]   ->   k_rot: [T, NKV, D]
# ----------------------------------------------------------------------------
def _rope_k_kernel(k_ref, c_ref, s_ref, o_ref):
    half = c_ref.shape[-1]
    k = k_ref[...].astype(jnp.float32)              # (tt, NKV, D)
    c = c_ref[...][:, None, :]                      # (tt, 1, half)
    s = s_ref[...][:, None, :]
    x1 = k[..., :half]
    x2 = k[..., half:]
    o_ref[...] = jnp.concatenate(
        [x1 * c - x2 * s, x2 * c + x1 * s], axis=-1).astype(o_ref.dtype)


def pallas_rope_k(k, cos, sin, *, block_t=512):
    T, NKV, D = k.shape
    half = cos.shape[-1]
    tt = _pick_tile(T, block_t)
    return pl.pallas_call(
        _rope_k_kernel,
        out_shape=jax.ShapeDtypeStruct((T, NKV, D), k.dtype),
        grid_spec=pltpu.PrefetchScalarGridSpec(
            num_scalar_prefetch=0,
            grid=(T // tt,),
            in_specs=[
                pl.BlockSpec((tt, NKV, D), lambda t: (t, 0, 0)),
                pl.BlockSpec((tt, half), lambda t: (t, 0)),
                pl.BlockSpec((tt, half), lambda t: (t, 0)),
            ],
            out_specs=pl.BlockSpec((tt, NKV, D), lambda t: (t, 0, 0)),
        ),
        compiler_params=pltpu.CompilerParams(
            dimension_semantics=("parallel",),
            vmem_limit_bytes=32 * 1024 * 1024,
        ),
    )(k, cos, sin)


# ----------------------------------------------------------------------------
# Kernel 3: causal GQA flash attention (online softmax)
#   q: [T, NKV, G, D]   k, v: [T, NKV, 1, D] (K already RoPE'd)
#   cos/sin (for Q): [T, D/2]
#   grid = (T//tq, NKV, T//tk); all G query heads of a KV head per program.
# ----------------------------------------------------------------------------
def _flash_gqa_kernel(q_ref, k_ref, v_ref, cq_ref, sq_ref, o_ref,
                      q_scr, m_scr, l_scr, acc_scr, *, scaling):
    tq, G, D = q_ref.shape
    tk = k_ref.shape[0]
    half = D // 2
    f32_min = jnp.finfo(jnp.float32).min

    qi = pl.program_id(0)
    ki = pl.program_id(2)
    q_start = qi * tq
    k_start = ki * tk

    @pl.when(ki == 0)
    def _init():
        # RoPE + pre-scale Q ONCE per (q-block, kv-head); cache in VMEM scratch
        # so the inner kv loop does no RoPE / scaling VPU work on Q.
        q = q_ref[...].astype(jnp.float32)          # (tq, G, D)
        cq = cq_ref[...][:, None, :]                # (tq, 1, half)
        sq = sq_ref[...][:, None, :]
        x1 = q[..., :half]
        x2 = q[..., half:]
        q_rot = jnp.concatenate(
            [x1 * cq - x2 * sq, x2 * cq + x1 * sq], axis=-1)
        q_scr[...] = q_rot.reshape(tq * G, D) * scaling
        # f32 min (not -inf): robust even if a row's first block were masked.
        m_scr[...] = jnp.full_like(m_scr, f32_min)
        l_scr[...] = jnp.zeros_like(l_scr)
        acc_scr[...] = jnp.zeros_like(acc_scr)

    def update(apply_mask):
        k = k_ref[...].reshape(tk, D)
        v = v_ref[...].reshape(tk, D)
        # QK^T contracting the last dims of both operands (no k.T copy).
        s = lax.dot_general(
            q_scr[...], k.astype(jnp.float32),
            dimension_numbers=(((1,), (1,)), ((), ())),
            preferred_element_type=jnp.float32)     # (tq*G, tk)
        if apply_mask:
            # Only diagonal blocks pay for the mask iota/compare/select.
            lq = lax.broadcasted_iota(
                jnp.int32, (tq, G, tk), 0).reshape(tq * G, tk)
            lk = lax.broadcasted_iota(jnp.int32, (tq * G, tk), 1)
            s = jnp.where((k_start + lk) <= (q_start + lq), s, f32_min)

        m_prev = m_scr[...]
        m_new = jnp.maximum(m_prev, jnp.max(s, axis=-1, keepdims=True))
        alpha = jnp.exp(m_prev - m_new)
        p = jnp.exp(s - m_new)
        l_scr[...] = alpha * l_scr[...] + jnp.sum(p, axis=-1, keepdims=True)
        acc_scr[...] = alpha * acc_scr[...] + jnp.dot(
            p.astype(v.dtype), v, preferred_element_type=jnp.float32)
        m_scr[...] = m_new

    # Block classification (static tile sizes, traced grid position):
    #   full: every key in the block is visible to every query -> no mask.
    #   diag: partially visible -> masked path.
    #   else: fully in the future -> skipped (and its DMA is clamped away).
    no_mask_needed = (k_start + (tk - 1)) <= q_start
    block_needed = k_start <= (q_start + (tq - 1))

    @pl.when(no_mask_needed)
    def _full():
        update(apply_mask=False)

    @pl.when(jnp.logical_and(block_needed, jnp.logical_not(no_mask_needed)))
    def _diag():
        update(apply_mask=True)

    @pl.when(ki == pl.num_programs(2) - 1)
    def _finalize():
        # TODO(synk): pl.reciprocal(l, approx=True) + bf16 activations in
        #             production; exact f32 division kept for validation here.
        out = acc_scr[...] / l_scr[...]
        o_ref[...] = out.reshape(tq, G, D).astype(o_ref.dtype)


def pallas_flash_attention(q, k, v, cos, sin, scaling, *,
                           block_q=256, block_k=256):
    T, NKV, G, D = q.shape
    half = cos.shape[-1]
    NH = NKV * G
    tq = _pick_tile(T, block_q)
    tk = _pick_tile(T, block_k)
    nq, nk = T // tq, T // tk

    def q_map(qi, kv, ki):
        return (qi, kv, 0, 0)

    def kv_map(qi, kv, ki):
        # Clamp causally-skipped future key blocks to the last valid block so
        # the revisited block index issues no DMA.
        last_valid = (qi * tq + (tq - 1)) // tk
        return (jnp.minimum(ki, last_valid), kv, 0, 0)

    def rope_map(qi, kv, ki):
        return (qi, 0)

    kernel = functools.partial(_flash_gqa_kernel, scaling=scaling)
    itemsize = q.dtype.itemsize
    return pl.pallas_call(
        kernel,
        out_shape=jax.ShapeDtypeStruct((T, NKV, G, D), q.dtype),
        grid_spec=pltpu.PrefetchScalarGridSpec(
            num_scalar_prefetch=0,
            grid=(nq, NKV, nk),
            in_specs=[
                pl.BlockSpec((tq, None, G, D), q_map),
                pl.BlockSpec((tk, None, 1, D), kv_map),
                pl.BlockSpec((tk, None, 1, D), kv_map),
                pl.BlockSpec((tq, half), rope_map),
                pl.BlockSpec((tq, half), rope_map),
            ],
            out_specs=pl.BlockSpec((tq, None, G, D), q_map),
            scratch_shapes=[
                pltpu.VMEM((tq * G, D), jnp.float32),   # cached RoPE'd, scaled Q
                pltpu.VMEM((tq * G, 1), jnp.float32),   # running max m
                pltpu.VMEM((tq * G, 1), jnp.float32),   # running denominator l
                pltpu.VMEM((tq * G, D), jnp.float32),   # running numerator acc
            ],
        ),
        compiler_params=pltpu.CompilerParams(
            dimension_semantics=("parallel", "parallel", "arbitrary"),
            vmem_limit_bytes=32 * 1024 * 1024,
        ),
        cost_estimate=pl.CostEstimate(
            flops=2 * NH * T * T * D,                      # causal (~half dense)
            transcendentals=NH * T * T // 2,
            bytes_accessed=(2 * NH * T * D
                            + NKV * T * D * (nq + 1)) * itemsize,
        ),
    )(q, k, v, cos, sin)


# ----------------------------------------------------------------------------
# XverseAttention forward (wrapper / glue)
# ----------------------------------------------------------------------------
class XverseAttentionPallas:
    def __init__(self, hidden_size, num_heads, num_kv_heads,
                 rope_theta=10000.0, max_position_embeddings=8192, key=None):
        self.hidden_size = hidden_size
        self.num_heads = num_heads
        self.num_kv_heads = num_kv_heads
        self.head_dim = hidden_size // num_heads
        self.q_size = self.num_heads * self.head_dim
        self.kv_size = self.num_kv_heads * self.head_dim
        self.scaling = self.head_dim ** -0.5
        self.rope_theta = rope_theta
        self.max_position_embeddings = max_position_embeddings

        k1, k2 = jax.random.split(key)
        qkv_out = self.q_size + 2 * self.kv_size
        # Weights stored pre-transposed ([in, out]) so forward() never builds
        # a .T copy of the weight in HBM (nn.Linear stores [out, in]).
        self.w_qkv = jax.random.normal(
            k1, (hidden_size, qkv_out), jnp.float32) * 0.02
        self.w_o = jax.random.normal(
            k2, (self.q_size, hidden_size), jnp.float32) * 0.02

    def _rope_tables(self, positions):
        # Half-width tables (T, D/2); the kernels apply them to both halves.
        D = self.head_dim
        inv_freq = 1.0 / (self.rope_theta **
                          (jnp.arange(0, D, 2, dtype=jnp.float32) / D))
        freqs = positions.astype(jnp.float32)[:, None] * inv_freq[None, :]
        return jnp.cos(freqs), jnp.sin(freqs)

    def forward(self, positions, hidden_states, *, block_q=256, block_k=256):
        T = hidden_states.shape[0]
        NH, NKV, D = self.num_heads, self.num_kv_heads, self.head_dim
        G = NH // NKV

        # fused QKV projection (tiled Pallas matmul).
        qkv = pallas_matmul(hidden_states, self.w_qkv)
        q, k, v = jnp.split(
            qkv, [self.q_size, self.q_size + self.kv_size], axis=-1)

        cos, sin = self._rope_tables(positions)             # (T, D/2)

        # Pre-rotate K once (tiny one-pass Pallas kernel); Q RoPE is fused into
        # the attention kernel and cached in VMEM scratch per q-block.
        k_rot = pallas_rope_k(k.reshape(T, NKV, D), cos, sin)

        # Free, contiguous reshapes only — no HBM transposes.
        q4 = q.reshape(T, NKV, G, D)
        k4 = k_rot.reshape(T, NKV, 1, D)
        v4 = v.reshape(T, NKV, 1, D)

        # fused causal GQA flash attention (Pallas, online softmax).
        attn = pallas_flash_attention(q4, k4, v4, cos, sin, self.scaling,
                                      block_q=block_q, block_k=block_k)

        # [T, NKV, G, D] -> [T, NH*D] (contiguous, free).
        attn = attn.reshape(T, NH * D)

        # output projection (tiled Pallas matmul).
        return pallas_matmul(attn, self.w_o)


# ----------------------------------------------------------------------------
# Pure-JAX reference for validation
# ----------------------------------------------------------------------------
def reference_forward(mod, positions, hidden_states):
    T = hidden_states.shape[0]
    NH, NKV, D = mod.num_heads, mod.num_kv_heads, mod.head_dim
    qkv = hidden_states @ mod.w_qkv
    q, k, v = jnp.split(qkv, [mod.q_size, mod.q_size + mod.kv_size], axis=-1)
    q = q.reshape(T, NH, D)
    k = k.reshape(T, NKV, D)
    v = v.reshape(T, NKV, D)

    cos_h, sin_h = mod._rope_tables(positions)
    cos = jnp.concatenate([cos_h, cos_h], -1)[:, None, :]
    sin = jnp.concatenate([sin_h, sin_h], -1)[:, None, :]

    def rot(x):
        x1, x2 = x[..., :D // 2], x[..., D // 2:]
        return jnp.concatenate([-x2, x1], -1)

    q = q * cos + rot(q) * sin
    k = k * cos + rot(k) * sin

    group = NH // NKV
    k_full = jnp.repeat(k, group, axis=1)
    v_full = jnp.repeat(v, group, axis=1)

    scores = jnp.einsum("qhd,khd->hqk", q, k_full) * mod.scaling
    mask = jnp.tril(jnp.ones((T, T), bool))
    scores = jnp.where(mask[None], scores, -jnp.inf)
    p = jax.nn.softmax(scores, axis=-1)
    attn = jnp.einsum("hqk,khd->qhd", p, v_full).reshape(T, NH * D)
    return attn @ mod.w_o


if __name__ == "__main__":
    key = jax.random.PRNGKey(0)
    k_param, k_x = jax.random.split(key)

    T = 64
    hidden_size = 32
    num_heads = 4
    num_kv_heads = 2

    mod = XverseAttentionPallas(hidden_size, num_heads, num_kv_heads,
                                key=k_param)

    hidden_states = jax.random.normal(k_x, (T, hidden_size), jnp.float32)
    positions = jnp.arange(T, dtype=jnp.int32)

    # Small blocks so the demo sequence exercises the multi-block causal path
    # (full / diagonal / skipped kv blocks and the clamped K/V index maps).
    out = mod.forward(positions, hidden_states, block_q=32, block_k=32)
    out = jax.block_until_ready(out)

    ref = reference_forward(mod, positions, hidden_states)
    assert out.shape == (T, hidden_size)
    # Tolerance covers MXU default-precision (bf16 input rounding) differences
    # between the Mosaic and XLA f32 dot lowerings.
    assert jnp.allclose(out, ref, atol=2e-4, rtol=2e-4), (
        f"max err {jnp.max(jnp.abs(out - ref))}")

    print("KERNEL_OK")
</pallas_src>

<mosaic_0001>
module attributes {stable_mosaic.version = 11 : i64} {
  func.func @_matmul_kernel(%arg0: i32, %arg1: i32, %arg2: i32, %arg3: memref<64x32xf32, #tpu.memory_space<vmem>>, %arg4: memref<32x64xf32, #tpu.memory_space<vmem>>, %arg5: memref<64x64xf32, #tpu.memory_space<vmem>>, %arg6: memref<64x64xf32, #tpu.memory_space<vmem>>) attributes {dimension_semantics = [#tpu.dimension_semantics<parallel>, #tpu.dimension_semantics<parallel>, #tpu.dimension_semantics<arbitrary>], iteration_bounds = array<i64: 1, 1, 1>, scalar_prefetch = 0 : i64, scratch_operands = 1 : i64, tpu.core_type = #tpu.core_type<tc>, window_params = [{transform_indices = @transform_0, window_bounds = array<i64: 64, 32>}, {transform_indices = @transform_1, window_bounds = array<i64: 32, 64>}, {transform_indices = @transform_2, window_bounds = array<i64: 64, 64>}]} {
    %c0_i32 = arith.constant 0 : i32
    %0 = arith.cmpi eq, %arg2, %c0_i32 : i32
    %1 = arith.extui %0 : i1 to i32
    %c0_i32_0 = arith.constant 0 : i32
    %2 = arith.cmpi ne, %1, %c0_i32_0 : i32
    scf.if %2 {
      %cst_10 = arith.constant 0.000000e+00 : f32
      %12 = vector.broadcast %cst_10 : f32 to vector<64x64xf32>
      %c0_11 = arith.constant 0 : index
      %c0_12 = arith.constant 0 : index
      %13 = vector.load %arg6[%c0_11, %c0_12] : memref<64x64xf32, #tpu.memory_space<vmem>>, vector<64x64xf32>
      tpu.vector_store %arg6[%c0_11, %c0_12], %12 {strides = array<i32>} : memref<64x64xf32, #tpu.memory_space<vmem>>, vector<64x64xf32>,
    } else {
    }
    %c0 = arith.constant 0 : index
    %c0_1 = arith.constant 0 : index
    %3 = vector.load %arg6[%c0, %c0_1] : memref<64x64xf32, #tpu.memory_space<vmem>>, vector<64x64xf32>
    %c0_2 = arith.constant 0 : index
    %c0_3 = arith.constant 0 : index
    %4 = vector.load %arg3[%c0_2, %c0_3] : memref<64x32xf32, #tpu.memory_space<vmem>>, vector<64x32xf32>
    %c0_4 = arith.constant 0 : index
    %c0_5 = arith.constant 0 : index
    %5 = vector.load %arg4[%c0_4, %c0_5] : memref<32x64xf32, #tpu.memory_space<vmem>>, vector<32x64xf32>
    %cst = arith.constant dense<0.000000e+00> : vector<64x64xf32>
    %6 = tpu.matmul %4, %5, %cst {dimension_numbers = #tpu.dot_dimension_numbers<[1], [0], [0], [1], [0, 0, 1, 1], [], []>} : vector<64x32xf32>, vector<32x64xf32>, vector<64x64xf32> -> vector<64x64xf32>
    %7 = arith.addf %3, %6 : vector<64x64xf32>
    %c0_6 = arith.constant 0 : index
    %c0_7 = arith.constant 0 : index
    %8 = vector.load %arg6[%c0_6, %c0_7] : memref<64x64xf32, #tpu.memory_space<vmem>>, vector<64x64xf32>
    tpu.vector_store %arg6[%c0_6, %c0_7], %7 {strides = array<i32>} : memref<64x64xf32, #tpu.memory_space<vmem>>, vector<64x64xf32>,
    %c0_i32_8 = arith.constant 0 : i32
    %9 = arith.cmpi eq, %arg2, %c0_i32_8 : i32
    %10 = arith.extui %9 : i1 to i32
    %c0_i32_9 = arith.constant 0 : i32
    %11 = arith.cmpi ne, %10, %c0_i32_9 : i32
    scf.if %11 {
      %c0_10 = arith.constant 0 : index
      %c0_11 = arith.constant 0 : index
      %12 = vector.load %arg6[%c0_10, %c0_11] : memref<64x64xf32, #tpu.memory_space<vmem>>, vector<64x64xf32>
      %c0_12 = arith.constant 0 : index
      %c0_13 = arith.constant 0 : index
      %13 = vector.load %arg5[%c0_12, %c0_13] : memref<64x64xf32, #tpu.memory_space<vmem>>, vector<64x64xf32>
      tpu.vector_store %arg5[%c0_12, %c0_13], %12 {strides = array<i32>} : memref<64x64xf32, #tpu.memory_space<vmem>>, vector<64x64xf32>,
    } else {
    }
    return
  }
  func.func @transform_0(%arg0: i32, %arg1: i32, %arg2: i32) -> (i32, i32) {
    %c0_i32 = arith.constant 0 : i32
    return %arg0, %arg2 : i32, i32
  }
  func.func @transform_1(%arg0: i32, %arg1: i32, %arg2: i32) -> (i32, i32) {
    %c0_i32 = arith.constant 0 : i32
    return %arg2, %arg1 : i32, i32
  }
  func.func @transform_2(%arg0: i32, %arg1: i32, %arg2: i32) -> (i32, i32) {
    %c0_i32 = arith.constant 0 : i32
    return %arg0, %arg1 : i32, i32
  }
}

</mosaic_0001>

<llo_original>
// kernel: tpu_custom_call.1
$region0: #{tpu_custom_call.1}
  #allocation0 [shape = 'u32[]', space=smem, size = 0x4, offset = 0x4, fixed_abs, tag = 'smem constant byte address 0x4 - core index']
  #allocation1 [shape = 'u32[144,128]{1,0:T(1,128)}', space=vmem, size = 0x12000, scoped, tag = 'internal scratch']
  #allocation2 [shape = 'f32[64,64]{1,0:T(8,128)}', space=vmem, size = 0x8000, scoped, tag = 'scratch operand']
  %s0 = inlined_call_operand.vmem [shape: f32[64,32], index: 0, kind: input, shape index: {}]
  %s1 = inlined_call_operand.vmem [shape: f32[32,64], index: 1, kind: input, shape index: {}]
  %s2 = inlined_call_operand.hbm [shape: f32[64,64], index: 2, kind: output, shape index: {}]
  %s3 = sld [smem:[#allocation0]]
  $region26: #{tpu_custom_call.1} parent=0
    _
  %s5 = ssub.s32 1, %s3
  %s6 = scalar_select 0, %s5, %s3
  $region1: #{tpu_custom_call.1} parent=0
    #allocation3 [shape = 'u8[32768]{0}', space=vmem, size = 0x8000, scoped, tag = 'output window, operand 0, single buffered']
    #allocation4 [shape = 's32[1]{0}', space=sflag, size = 0x4, scoped, tag = 'scoped memory for tpu_custom_call.1']
    %7 = vsyncpa [#allocation4], 0
    // Predicated region
    $region2: #{tpu_custom_call.1} parent=1 // pred_check
      _
    $region3: #{tpu_custom_call.1} parent=1 // pred_check_branch
      %9 = sbr.rel (0) target = $region5
    $region4: #{tpu_custom_call.1} parent=1 // pred_region
      _
    $region5: #{tpu_custom_call.1} parent=1 // pred_fallthru
      _
    // Predicated region
    $region6: #{tpu_custom_call.1} parent=1 // pred_check
      _
    $region7: #{tpu_custom_call.1} parent=1 // pred_check_branch
      %11 = sbr.rel (0) target = $region9
    $region8: #{tpu_custom_call.1} parent=1 // pred_region
      _
    $region9: #{tpu_custom_call.1} parent=1 // pred_fallthru
      _
    %p12 = scmp.eq.s32.totalorder 0, 0
    // Predicated region
    $region10: #{tpu_custom_call.1} parent=1 // pred_check
      %p13 = pneg %p12
    $region11: #{tpu_custom_call.1} parent=1 // pred_check_branch
      %15 = sbr.rel (%p13) target = $region13
    $region12: #{tpu_custom_call.1} parent=1 // pred_region
      %vm16 = vcmask 523264
      %17 = vst.msk [vmem:[#allocation2] sm:$0xff] %vm16, 0.0
      %18 = vst.msk [vmem:[#allocation2 + $0x8] sm:$0xff] %vm16, 0.0
      %19 = vst.msk [vmem:[#allocation2 + $0x10] sm:$0xff] %vm16, 0.0
      %20 = vst.msk [vmem:[#allocation2 + $0x18] sm:$0xff] %vm16, 0.0
      %21 = vst.msk [vmem:[#allocation2 + $0x20] sm:$0xff] %vm16, 0.0
      %22 = vst.msk [vmem:[#allocation2 + $0x28] sm:$0xff] %vm16, 0.0
      %23 = vst.msk [vmem:[#allocation2 + $0x30] sm:$0xff] %vm16, 0.0
      %24 = vst.msk [vmem:[#allocation2 + $0x38] sm:$0xff] %vm16, 0.0
    $region13: #{tpu_custom_call.1} parent=1 // pred_fallthru
      _
    %v25 = vld [vmem:[#allocation2] sm:$0xff]
    %v26 = vld [vmem:[#allocation2 + $0x8] sm:$0xff]
    %v27 = vld [vmem:[#allocation2 + $0x10] sm:$0xff]
    %v28 = vld [vmem:[#allocation2 + $0x18] sm:$0xff]
    %v29 = vld [vmem:[#allocation2 + $0x20] sm:$0xff]
    %v30 = vld [vmem:[#allocation2 + $0x28] sm:$0xff]
    %v31 = vld [vmem:[#allocation2 + $0x30] sm:$0xff]
    %v32 = vld [vmem:[#allocation2 + $0x38] sm:$0xff]
    %v33 = vld [vmem:[%s0] sm:$0xff]
    %v34 = vld [vmem:[%s0 + $0x8] sm:$0xff]
    %v35 = vld [vmem:[%s0 + $0x10] sm:$0xff]
    %v36 = vld [vmem:[%s0 + $0x18] sm:$0xff]
    %v37 = vld [vmem:[%s0 + $0x20] sm:$0xff]
    %v38 = vld [vmem:[%s0 + $0x28] sm:$0xff]
    %v39 = vld [vmem:[%s0 + $0x30] sm:$0xff]
    %v40 = vld [vmem:[%s0 + $0x38] sm:$0xff]
    %v41 = vld [vmem:[%s1] sm:$0xff]
    %v42 = vld [vmem:[%s1 + $0x8] sm:$0xff]
    %v43 = vld [vmem:[%s1 + $0x10] sm:$0xff]
    %v44 = vld [vmem:[%s1 + $0x18] sm:$0xff]
    %vm45 = vcmask 261120
    %v47 = vsel %vm45, %v33, 0
    %v50 = vsel %vm45, %v34, 0
    %v53 = vsel %vm45, %v35, 0
    %v56 = vsel %vm45, %v36, 0
    %v59 = vsel %vm45, %v37, 0
    %v62 = vsel %vm45, %v38, 0
    %v65 = vsel %vm45, %v39, 0
    %v68 = vsel %vm45, %v40, 0
    %70 = vmatprep.subr.mxu0 0.0
    %71 = vmatpush1.msra.mxu0 %v41
    %72 = vmatprep.subr.mxu0 0.0
    %73 = vmatpush1.msra.mxu0 %v42
    %74 = vmatprep.subr.mxu0 0.0
    %75 = vmatpush1.msra.mxu0 %v43
    %76 = vmatprep.subr.mxu0 0.0
    %77 = vmatpush1.msra.mxu0 %v44
    %78 = vmatprep.subr.mxu0 0.0
    %79 = vmatpush1.msra.mxu0 0.0
    %80 = vmatprep.subr.mxu0 0.0
    %81 = vmatpush1.msra.mxu0 0.0
    %82 = vmatprep.subr.mxu0 0.0
    %83 = vmatpush1.msra.mxu0 0.0
    %84 = vmatprep.subr.mxu0 0.0
    %85 = vmatpush1.msra.mxu0 0.0
    %86 = vmatprep.subr.mxu0 0.0
    %87 = vmatpush1.msra.mxu0 0.0
    %88 = vmatprep.subr.mxu0 0.0
    %89 = vmatpush1.msra.mxu0 0.0
    %90 = vmatprep.subr.mxu0 0.0
    %91 = vmatpush1.msra.mxu0 0.0
    %92 = vmatprep.subr.mxu0 0.0
    %93 = vmatpush1.msra.mxu0 0.0
    %94 = vmatprep.subr.mxu0 0.0
    %95 = vmatpush1.msra.mxu0 0.0
    %96 = vmatprep.subr.mxu0 0.0
    %97 = vmatpush1.msra.mxu0 0.0
    %98 = vmatprep.subr.mxu0 0.0
    %99 = vmatpush1.msra.mxu0 0.0
    %100 = vmatprep.subr.mxu0 0.0
    %101 = vmatpush1.msra.mxu0 0.0
    %102 = vmatprep.subr.mxu0 0.0
    %103 = vmatpush1.msra.mxu0 0.0
    %104 = vmatprep.subr.mxu0 0.0
    %105 = vmatpush1.msra.mxu0 0.0
    %106 = vmatprep.subr.mxu0 0.0
    %107 = vmatpush1.msra.mxu0 0.0
    %108 = vmatprep.subr.mxu0 0.0
    %109 = vmatpush1.msra.mxu0 0.0
    %110 = vmatprep.subr.mxu0 0.0
    %111 = vmatpush1.msra.mxu0 0.0
    %112 = vmatprep.subr.mxu0 0.0
    %113 = vmatpush1.msra.mxu0 0.0
    %114 = vmatprep.subr.mxu0 0.0
    %115 = vmatpush1.msra.mxu0 0.0
    %116 = vmatprep.subr.mxu0 0.0
    %117 = vmatpush1.msra.mxu0 0.0
    %118 = vmatprep.subr.mxu0 0.0
    %119 = vmatpush1.msra.mxu0 0.0
    %120 = vmatprep.subr.mxu0 0.0
    %121 = vmatpush1.msra.mxu0 0.0
    %122 = vmatprep.subr.mxu0 0.0
    %123 = vmatpush1.msra.mxu0 0.0
    %124 = vmatprep.subr.mxu0 0.0
    %125 = vmatpush1.msra.mxu0 0.0
    %126 = vmatprep.subr.mxu0 0.0
    %127 = vmatpush1.msra.mxu0 0.0
    %128 = vmatprep.subr.mxu0 0.0
    %129 = vmatpush1.msra.mxu0 0.0
    %130 = vmatprep.subr.mxu0 0.0
    %131 = vmatpush1.msra.mxu0 0.0
    %132 = vmatprep.subr.mxu0 0.0
    %133 = vmatpush1.msra.mxu0 0.0
    %134 = vmatprep.mubr.f32.mxu0 0.0
    %135 = vmatmul.mubr.f32.gmra.mrb[0].mxu0 %v47
    %v136 = vpop.f32.mrb[0].mxu0
    %v137 = vadd.f32 0.0, %v136
    %v138 = vpop.f32.mrb[0].mxu0
    %139 = vmatprep.mubr.f32.mxu0 0.0
    %140 = vmatmul.mubr.f32.gmra.mrb[0].mxu0 %v50
    %v141 = vpop.f32.mrb[0].mxu0
    %v142 = vadd.f32 0.0, %v141
    %v143 = vpop.f32.mrb[0].mxu0
    %144 = vmatprep.mubr.f32.mxu0 0.0
    %145 = vmatmul.mubr.f32.gmra.mrb[0].mxu0 %v53
    %v146 = vpop.f32.mrb[0].mxu0
    %v147 = vadd.f32 0.0, %v146
    %v148 = vpop.f32.mrb[0].mxu0
    %149 = vmatprep.mubr.f32.mxu0 0.0
    %150 = vmatmul.mubr.f32.gmra.mrb[0].mxu0 %v56
    %v151 = vpop.f32.mrb[0].mxu0
    %v152 = vadd.f32 0.0, %v151
    %v153 = vpop.f32.mrb[0].mxu0
    %154 = vmatprep.mubr.f32.mxu0 0.0
    %155 = vmatmul.mubr.f32.gmra.mrb[0].mxu0 %v59
    %v156 = vpop.f32.mrb[0].mxu0
    %v157 = vadd.f32 0.0, %v156
    %v158 = vpop.f32.mrb[0].mxu0
    %159 = vmatprep.mubr.f32.mxu0 0.0
    %160 = vmatmul.mubr.f32.gmra.mrb[0].mxu0 %v62
    %v161 = vpop.f32.mrb[0].mxu0
    %v162 = vadd.f32 0.0, %v161
    %v163 = vpop.f32.mrb[0].mxu0
    %164 = vmatprep.mubr.f32.mxu0 0.0
    %165 = vmatmul.mubr.f32.gmra.mrb[0].mxu0 %v65
    %v166 = vpop.f32.mrb[0].mxu0
    %v167 = vadd.f32 0.0, %v166
    %v168 = vpop.f32.mrb[0].mxu0
    %169 = vmatprep.mubr.f32.mxu0 0.0
    %170 = vmatmul.mubr.f32.gmra.mrb[0].mxu0 %v68
    %v171 = vpop.f32.mrb[0].mxu0
    %v172 = vadd.f32 0.0, %v171
    %v173 = vpop.f32.mrb[0].mxu0
    %174 = vdwg.mxu0
    %v175 = vadd.f32 %v25, %v137
    %v176 = vadd.f32 %v26, %v142
    %v177 = vadd.f32 %v27, %v147
    %v178 = vadd.f32 %v28, %v152
    %v179 = vadd.f32 %v29, %v157
    %v180 = vadd.f32 %v30, %v162
    %v181 = vadd.f32 %v31, %v167
    %v182 = vadd.f32 %v32, %v172
    %vm183 = vcmask 523264
    %184 = vst.msk [vmem:[#allocation2] sm:$0xff] %vm183, %v175
    %185 = vst.msk [vmem:[#allocation2 + $0x8] sm:$0xff] %vm183, %v176
    %186 = vst.msk [vmem:[#allocation2 + $0x10] sm:$0xff] %vm183, %v177
    %187 = vst.msk [vmem:[#allocation2 + $0x18] sm:$0xff] %vm183, %v178
    %188 = vst.msk [vmem:[#allocation2 + $0x20] sm:$0xff] %vm183, %v179
    %189 = vst.msk [vmem:[#allocation2 + $0x28] sm:$0xff] %vm183, %v180
    %190 = vst.msk [vmem:[#allocation2 + $0x30] sm:$0xff] %vm183, %v181
    %191 = vst.msk [vmem:[#allocation2 + $0x38] sm:$0xff] %vm183, %v182
    // Predicated region
    $region14: #{tpu_custom_call.1} parent=1 // pred_check
      %p192 = pneg %p12
    $region15: #{tpu_custom_call.1} parent=1 // pred_check_branch
      %194 = sbr.rel (%p192) target = $region17
    $region16: #{tpu_custom_call.1} parent=1 // pred_region
      %v195 = vld [vmem:[#allocation2] sm:$0xff]
      %v196 = vld [vmem:[#allocation2 + $0x8] sm:$0xff]
      %v197 = vld [vmem:[#allocation2 + $0x10] sm:$0xff]
      %v198 = vld [vmem:[#allocation2 + $0x18] sm:$0xff]
      %v199 = vld [vmem:[#allocation2 + $0x20] sm:$0xff]
      %v200 = vld [vmem:[#allocation2 + $0x28] sm:$0xff]
      %v201 = vld [vmem:[#allocation2 + $0x30] sm:$0xff]
      %v202 = vld [vmem:[#allocation2 + $0x38] sm:$0xff]
      %203 = vst.msk [vmem:[#allocation3] sm:$0xff] %vm183, %v195
      %204 = vst.msk [vmem:[#allocation3 + $0x8] sm:$0xff] %vm183, %v196
      %205 = vst.msk [vmem:[#allocation3 + $0x10] sm:$0xff] %vm183, %v197
      %206 = vst.msk [vmem:[#allocation3 + $0x18] sm:$0xff] %vm183, %v198
      %207 = vst.msk [vmem:[#allocation3 + $0x20] sm:$0xff] %vm183, %v199
      %208 = vst.msk [vmem:[#allocation3 + $0x28] sm:$0xff] %vm183, %v200
      %209 = vst.msk [vmem:[#allocation3 + $0x30] sm:$0xff] %vm183, %v201
      %210 = vst.msk [vmem:[#allocation3 + $0x38] sm:$0xff] %vm183, %v202
    $region17: #{tpu_custom_call.1} parent=1 // pred_fallthru
      _
    // Predicated region
    $region18: #{tpu_custom_call.1} parent=1 // pred_check
      _
    $region19: #{tpu_custom_call.1} parent=1 // pred_check_branch
      %212 = sbr.rel (0) target = $region21
    $region20: #{tpu_custom_call.1} parent=1 // pred_region
      %s214 = ssub.s32 1024, 1024
      %215 = vsyncadd [#allocation4], %s214
      %s216 = sshll.u32 [#allocation3], 4
      %s217 = int_to_ptr.vmem [resolvable:$true] %s216
      %222 = dma.vmem_to_hbm [thread:$0]  %s217, 1024, %s2, [#allocation4], 128, 128, 8
    $region21: #{tpu_custom_call.1} parent=1 // pred_fallthru
      _
    // Predicated region
    $region22: #{tpu_custom_call.1} parent=1 // pred_check
      _
    $region23: #{tpu_custom_call.1} parent=1 // pred_check_branch
      %224 = sbr.rel (0) target = $region25
    $region24: #{tpu_custom_call.1} parent=1 // pred_region
      %225 = dma.done [#allocation4], 1024
    $region25: #{tpu_custom_call.1} parent=1 // pred_fallthru
      _
    %226 = vsyncpa [#allocation4], 1

</llo_original>
